<compile_context>
chip_gen: v7x
topology: tpu7x:2x2x1
jax: 0.10.0
libtpu: 0.0.40
codegen_flags: <defaults>
</compile_context>

<pallas_src>
import math

import jax
import jax.numpy as jnp
from jax.experimental import pallas as pl
from jax.experimental.pallas import tpu as pltpu


def _round_up(x, m):
    return (x + m - 1) // m * m


def lstm_cell_kernel(xh_ref, w_ref, b_ref, c_ref, h_out_ref, c_out_ref, acc_ref):
    """One (batch-tile, hidden-tile) block of an LSTM step, accumulated over K.

    xh_ref : (tm, tk)        concat([x, h_prev]) tile (compute dtype)
    w_ref  : (4, tk, tn)     per-gate weight panels, contraction dim first
    b_ref  : (4, tn)         per-gate bias (f32)
    c_ref  : (tm, tn)        previous cell-state tile
    acc_ref: (4, tm, tn) f32 gate pre-activation accumulator (VMEM scratch)
    """
    k = pl.program_id(2)

    @pl.when(k == 0)
    def _init():
        acc_ref[...] = jnp.zeros_like(acc_ref)

    xh = xh_ref[...]
    # Four lane-aligned per-gate MXU matmuls sharing the same LHS tile.
    for g in range(4):
        acc_ref[g] += jnp.dot(xh, w_ref[g], preferred_element_type=jnp.float32)

    @pl.when(k == pl.num_programs(2) - 1)
    def _finalize():
        gates = acc_ref[...] + b_ref[...].astype(jnp.float32)[:, None, :]

        def sigmoid(v):
            # tanh-based sigmoid: single EUP op instead of exp + divide.
            return 0.5 * jnp.tanh(0.5 * v) + 0.5

        f_gate = sigmoid(gates[0])      # forget gate   (module's gate order: f,i,g,o)
        i_gate = sigmoid(gates[1])      # input gate
        g_cand = jnp.tanh(gates[2])     # cell candidate
        o_gate = sigmoid(gates[3])      # output gate

        c_next = f_gate * c_ref[...].astype(jnp.float32) + i_gate * g_cand
        h_next = o_gate * jnp.tanh(c_next)

        c_out_ref[...] = c_next.astype(c_out_ref.dtype)
        h_out_ref[...] = h_next.astype(h_out_ref.dtype)


def prepare_params(weight, bias, hidden_size, compute_dtype=jnp.float32):
    """Convert PyTorch-layout params to kernel layout ONCE (off the step path).

    weight: [4*H, I+H]   (this module's gate order: forget, input, cell, output)
    bias:   [4*H]
    Returns:
      w4: [4, I+H, H]  per-gate, contraction-dim-first panels (compute_dtype)
      b4: [4, H]       per-gate bias rows                     (float32)
    """
    four_h, k_dim = weight.shape
    h = hidden_size
    assert four_h == 4 * h
    w4 = weight.reshape(4, h, k_dim).transpose(0, 2, 1).astype(compute_dtype)
    b4 = bias.reshape(4, h).astype(jnp.float32)
    return w4, b4


def lstm_cell(x, h_prev, c_prev, w4, b4, *, tm_max=256, tn_max=512, tk_max=512):
    """Single fused LSTM-cell step.

    x: [B, I]; h_prev, c_prev: [B, H]; w4: [4, I+H, H]; b4: [4, H].
    Returns (h_next, c_next), both [B, H] in h_prev.dtype.
    """
    batch, input_size = x.shape
    hidden = h_prev.shape[1]
    k_dim = input_size + hidden
    compute_dtype = w4.dtype
    out_dtype = h_prev.dtype

    # Single fused contraction operand: [x, h_prev] laid out contiguously.
    xh = jnp.concatenate([x, h_prev], axis=1).astype(compute_dtype)

    # Tile selection: full extent when small (no padding, block == array dims),
    # otherwise hardware-aligned tiles (sublane mult of 8, lane mult of 128).
    tm = batch if batch <= tm_max else tm_max          # sublane dim
    tn = hidden if hidden <= tn_max else tn_max        # lane dim (per gate)
    tk = k_dim if k_dim <= tk_max else tk_max          # contraction dim

    bp = _round_up(batch, tm)
    hp = _round_up(hidden, tn)
    kp = _round_up(k_dim, tk)

    if (bp, kp) != (batch, k_dim):
        xh = jnp.pad(xh, ((0, bp - batch), (0, kp - k_dim)))
    if (kp, hp) != (k_dim, hidden):
        w4 = jnp.pad(w4, ((0, 0), (0, kp - k_dim), (0, hp - hidden)))
    if hp != hidden:
        b4 = jnp.pad(b4, ((0, 0), (0, hp - hidden)))
    c_in = c_prev
    if (bp, hp) != (batch, hidden):
        c_in = jnp.pad(c_in, ((0, bp - batch), (0, hp - hidden)))

    grid = (bp // tm, hp // tn, kp // tk)

    h_next, c_next = pl.pallas_call(
        lstm_cell_kernel,
        out_shape=(
            jax.ShapeDtypeStruct((bp, hp), out_dtype),
            jax.ShapeDtypeStruct((bp, hp), out_dtype),
        ),
        grid_spec=pltpu.PrefetchScalarGridSpec(
            num_scalar_prefetch=0,
            grid=grid,
            in_specs=[
                pl.BlockSpec((tm, tk), lambda i, j, k: (i, k)),       # xh
                pl.BlockSpec((4, tk, tn), lambda i, j, k: (0, k, j)),  # w4
                pl.BlockSpec((4, tn), lambda i, j, k: (0, j)),         # b4
                pl.BlockSpec((tm, tn), lambda i, j, k: (i, j)),        # c_prev
            ],
            out_specs=(
                pl.BlockSpec((tm, tn), lambda i, j, k: (i, j)),        # h_next
                pl.BlockSpec((tm, tn), lambda i, j, k: (i, j)),        # c_next
            ),
            scratch_shapes=[pltpu.VMEM((4, tm, tn), jnp.float32)],
        ),
        compiler_params=pltpu.CompilerParams(
            dimension_semantics=("parallel", "parallel", "arbitrary"),
            vmem_limit_bytes=32 * 1024 * 1024,
        ),
    )(xh, w4, b4, c_in)

    if (bp, hp) != (batch, hidden):
        h_next = h_next[:batch, :hidden]
        c_next = c_next[:batch, :hidden]
    return h_next, c_next


def init_params(key, input_size, hidden_size):
    """Deterministic init matching the PyTorch module's reset_parameters:
    Xavier-uniform weight, zero bias except ones on the forget-gate slice."""
    fan_in = input_size + hidden_size
    fan_out = 4 * hidden_size
    limit = math.sqrt(6.0 / (fan_in + fan_out))
    weight = jax.random.uniform(
        key, (fan_out, fan_in), dtype=jnp.float32, minval=-limit, maxval=limit)
    bias = jnp.zeros((fan_out,), dtype=jnp.float32)
    bias = bias.at[:hidden_size].set(1.0)  # forget-gate bias = 1
    return weight, bias


def lstm_cell_ref(x, h_prev, c_prev, weight, bias):
    """Pure-JAX reference for correctness checking."""
    combined = jnp.concatenate([x, h_prev], axis=1)
    gates = combined @ weight.T + bias
    hidden = h_prev.shape[1]
    f = jax.nn.sigmoid(gates[:, 0 * hidden:1 * hidden])
    i = jax.nn.sigmoid(gates[:, 1 * hidden:2 * hidden])
    g = jnp.tanh(gates[:, 2 * hidden:3 * hidden])
    o = jax.nn.sigmoid(gates[:, 3 * hidden:4 * hidden])
    c_next = f * c_prev + i * g
    h_next = o * jnp.tanh(c_next)
    return h_next, c_next


if __name__ == "__main__":
    batch = 2
    input_size = 16
    hidden_size = 32

    key = jax.random.PRNGKey(0)
    k_w, k_x = jax.random.split(key)

    weight, bias = init_params(k_w, input_size, hidden_size)
    x = jax.random.normal(k_x, (batch, input_size), dtype=jnp.float32)

    # hidden_state=None path of the PyTorch module: zeros.
    h0 = jnp.zeros((batch, hidden_size), dtype=jnp.float32)
    c0 = jnp.zeros((batch, hidden_size), dtype=jnp.float32)

    h_ref, c_ref = lstm_cell_ref(x, h0, c0, weight, bias)

    # f32 path
    w4, b4 = prepare_params(weight, bias, hidden_size)   # hoisted, done once
    h_next, c_next = lstm_cell(x, h0, c0, w4, b4)
    jax.block_until_ready((h_next, c_next))
    assert jnp.allclose(h_next, h_ref, atol=1e-5, rtol=1e-5)
    assert jnp.allclose(c_next, c_ref, atol=1e-5, rtol=1e-5)

    # bf16 matmul-input path (halves weight HBM traffic; f32 accumulation).
    w4_bf, b4_bf = prepare_params(weight, bias, hidden_size,
                                  compute_dtype=jnp.bfloat16)
    h_bf, c_bf = lstm_cell(x, h0, c0, w4_bf, b4_bf)
    jax.block_until_ready((h_bf, c_bf))
    assert jnp.allclose(h_bf, h_ref, atol=5e-2)
    assert jnp.allclose(c_bf, c_ref, atol=5e-2)

    print("KERNEL_OK")
</pallas_src>

<mosaic_0001>
module attributes {stable_mosaic.version = 11 : i64} {
  func.func @lstm_cell_kernel(%arg0: i32, %arg1: i32, %arg2: i32, %arg3: memref<2x48xf32, #tpu.memory_space<vmem>>, %arg4: memref<4x48x32xf32, #tpu.memory_space<vmem>>, %arg5: memref<4x32xf32, #tpu.memory_space<vmem>>, %arg6: memref<2x32xf32, #tpu.memory_space<vmem>>, %arg7: memref<2x32xf32, #tpu.memory_space<vmem>>, %arg8: memref<2x32xf32, #tpu.memory_space<vmem>>, %arg9: memref<4x2x32xf32, #tpu.memory_space<vmem>>) attributes {dimension_semantics = [#tpu.dimension_semantics<parallel>, #tpu.dimension_semantics<parallel>, #tpu.dimension_semantics<arbitrary>], iteration_bounds = array<i64: 1, 1, 1>, scalar_prefetch = 0 : i64, scratch_operands = 1 : i64, tpu.core_type = #tpu.core_type<tc>, window_params = [{transform_indices = @transform_0, window_bounds = array<i64: 2, 48>}, {transform_indices = @transform_1, window_bounds = array<i64: 4, 48, 32>}, {transform_indices = @transform_2, window_bounds = array<i64: 4, 32>}, {transform_indices = @transform_3, window_bounds = array<i64: 2, 32>}, {transform_indices = @transform_4, window_bounds = array<i64: 2, 32>}, {transform_indices = @transform_5, window_bounds = array<i64: 2, 32>}]} {
    %c0_i32 = arith.constant 0 : i32
    %0 = arith.cmpi eq, %arg2, %c0_i32 : i32
    %1 = arith.extui %0 : i1 to i32
    %c0_i32_0 = arith.constant 0 : i32
    %2 = arith.cmpi ne, %1, %c0_i32_0 : i32
    scf.if %2 {
      %cst_40 = arith.constant 0.000000e+00 : f32
      %43 = vector.broadcast %cst_40 : f32 to vector<4x2x32xf32>
      %c0_41 = arith.constant 0 : index
      %c0_42 = arith.constant 0 : index
      %c0_43 = arith.constant 0 : index
      %44 = vector.load %arg9[%c0_41, %c0_42, %c0_43] : memref<4x2x32xf32, #tpu.memory_space<vmem>>, vector<4x2x32xf32>
      tpu.vector_store %arg9[%c0_41, %c0_42, %c0_43], %43 {strides = array<i32>} : memref<4x2x32xf32, #tpu.memory_space<vmem>>, vector<4x2x32xf32>,
    } else {
    }
    %c0 = arith.constant 0 : index
    %c0_1 = arith.constant 0 : index
    %3 = vector.load %arg3[%c0, %c0_1] : memref<2x48xf32, #tpu.memory_space<vmem>>, vector<2x48xf32>
    %c0_2 = arith.constant 0 : index
    %c0_3 = arith.constant 0 : index
    %c0_4 = arith.constant 0 : index
    %4 = vector.load %arg9[%c0_2, %c0_3, %c0_4] : memref<4x2x32xf32, #tpu.memory_space<vmem>>, vector<1x2x32xf32>
    %5 = vector.shape_cast %4 : vector<1x2x32xf32> to vector<2x32xf32>
    %c0_5 = arith.constant 0 : index
    %c0_6 = arith.constant 0 : index
    %c0_7 = arith.constant 0 : index
    %6 = vector.load %arg4[%c0_5, %c0_6, %c0_7] : memref<4x48x32xf32, #tpu.memory_space<vmem>>, vector<1x48x32xf32>
    %7 = vector.shape_cast %6 : vector<1x48x32xf32> to vector<48x32xf32>
    %cst = arith.constant dense<0.000000e+00> : vector<2x32xf32>
    %8 = tpu.matmul %3, %7, %cst {dimension_numbers = #tpu.dot_dimension_numbers<[1], [0], [0], [1], [0, 0, 1, 1], [], []>} : vector<2x48xf32>, vector<48x32xf32>, vector<2x32xf32> -> vector<2x32xf32>
    %9 = arith.addf %5, %8 : vector<2x32xf32>
    %c0_8 = arith.constant 0 : index
    %c0_9 = arith.constant 0 : index
    %c0_10 = arith.constant 0 : index
    %10 = vector.load %arg9[%c0_8, %c0_9, %c0_10] : memref<4x2x32xf32, #tpu.memory_space<vmem>>, vector<1x2x32xf32>
    %11 = vector.shape_cast %10 : vector<1x2x32xf32> to vector<2x32xf32>
    %12 = vector.shape_cast %9 : vector<2x32xf32> to vector<1x2x32xf32>
    tpu.vector_store %arg9[%c0_8, %c0_9, %c0_10], %12 {strides = array<i32>} : memref<4x2x32xf32, #tpu.memory_space<vmem>>, vector<1x2x32xf32>,
    %c1 = arith.constant 1 : index
    %c0_11 = arith.constant 0 : index
    %c0_12 = arith.constant 0 : index
    %13 = vector.load %arg9[%c1, %c0_11, %c0_12] : memref<4x2x32xf32, #tpu.memory_space<vmem>>, vector<1x2x32xf32>
    %14 = vector.shape_cast %13 : vector<1x2x32xf32> to vector<2x32xf32>
    %c1_13 = arith.constant 1 : index
    %c0_14 = arith.constant 0 : index
    %c0_15 = arith.constant 0 : index
    %15 = vector.load %arg4[%c1_13, %c0_14, %c0_15] : memref<4x48x32xf32, #tpu.memory_space<vmem>>, vector<1x48x32xf32>
    %16 = vector.shape_cast %15 : vector<1x48x32xf32> to vector<48x32xf32>
    %cst_16 = arith.constant dense<0.000000e+00> : vector<2x32xf32>
    %17 = tpu.matmul %3, %16, %cst_16 {dimension_numbers = #tpu.dot_dimension_numbers<[1], [0], [0], [1], [0, 0, 1, 1], [], []>} : vector<2x48xf32>, vector<48x32xf32>, vector<2x32xf32> -> vector<2x32xf32>
    %18 = arith.addf %14, %17 : vector<2x32xf32>
    %c1_17 = arith.constant 1 : index
    %c0_18 = arith.constant 0 : index
    %c0_19 = arith.constant 0 : index
    %19 = vector.load %arg9[%c1_17, %c0_18, %c0_19] : memref<4x2x32xf32, #tpu.memory_space<vmem>>, vector<1x2x32xf32>
    %20 = vector.shape_cast %19 : vector<1x2x32xf32> to vector<2x32xf32>
    %21 = vector.shape_cast %18 : vector<2x32xf32> to vector<1x2x32xf32>
    tpu.vector_store %arg9[%c1_17, %c0_18, %c0_19], %21 {strides = array<i32>} : memref<4x2x32xf32, #tpu.memory_space<vmem>>, vector<1x2x32xf32>,
    %c2 = arith.constant 2 : index
    %c0_20 = arith.constant 0 : index
    %c0_21 = arith.constant 0 : index
    %22 = vector.load %arg9[%c2, %c0_20, %c0_21] : memref<4x2x32xf32, #tpu.memory_space<vmem>>, vector<1x2x32xf32>
    %23 = vector.shape_cast %22 : vector<1x2x32xf32> to vector<2x32xf32>
    %c2_22 = arith.constant 2 : index
    %c0_23 = arith.constant 0 : index
    %c0_24 = arith.constant 0 : index
    %24 = vector.load %arg4[%c2_22, %c0_23, %c0_24] : memref<4x48x32xf32, #tpu.memory_space<vmem>>, vector<1x48x32xf32>
    %25 = vector.shape_cast %24 : vector<1x48x32xf32> to vector<48x32xf32>
    %cst_25 = arith.constant dense<0.000000e+00> : vector<2x32xf32>
    %26 = tpu.matmul %3, %25, %cst_25 {dimension_numbers = #tpu.dot_dimension_numbers<[1], [0], [0], [1], [0, 0, 1, 1], [], []>} : vector<2x48xf32>, vector<48x32xf32>, vector<2x32xf32> -> vector<2x32xf32>
    %27 = arith.addf %23, %26 : vector<2x32xf32>
    %c2_26 = arith.constant 2 : index
    %c0_27 = arith.constant 0 : index
    %c0_28 = arith.constant 0 : index
    %28 = vector.load %arg9[%c2_26, %c0_27, %c0_28] : memref<4x2x32xf32, #tpu.memory_space<vmem>>, vector<1x2x32xf32>
    %29 = vector.shape_cast %28 : vector<1x2x32xf32> to vector<2x32xf32>
    %30 = vector.shape_cast %27 : vector<2x32xf32> to vector<1x2x32xf32>
    tpu.vector_store %arg9[%c2_26, %c0_27, %c0_28], %30 {strides = array<i32>} : memref<4x2x32xf32, #tpu.memory_space<vmem>>, vector<1x2x32xf32>,
    %c3 = arith.constant 3 : index
    %c0_29 = arith.constant 0 : index
    %c0_30 = arith.constant 0 : index
    %31 = vector.load %arg9[%c3, %c0_29, %c0_30] : memref<4x2x32xf32, #tpu.memory_space<vmem>>, vector<1x2x32xf32>
    %32 = vector.shape_cast %31 : vector<1x2x32xf32> to vector<2x32xf32>
    %c3_31 = arith.constant 3 : index
    %c0_32 = arith.constant 0 : index
    %c0_33 = arith.constant 0 : index
    %33 = vector.load %arg4[%c3_31, %c0_32, %c0_33] : memref<4x48x32xf32, #tpu.memory_space<vmem>>, vector<1x48x32xf32>
    %34 = vector.shape_cast %33 : vector<1x48x32xf32> to vector<48x32xf32>
    %cst_34 = arith.constant dense<0.000000e+00> : vector<2x32xf32>
    %35 = tpu.matmul %3, %34, %cst_34 {dimension_numbers = #tpu.dot_dimension_numbers<[1], [0], [0], [1], [0, 0, 1, 1], [], []>} : vector<2x48xf32>, vector<48x32xf32>, vector<2x32xf32> -> vector<2x32xf32>
    %36 = arith.addf %32, %35 : vector<2x32xf32>
    %c3_35 = arith.constant 3 : index
    %c0_36 = arith.constant 0 : index
    %c0_37 = arith.constant 0 : index
    %37 = vector.load %arg9[%c3_35, %c0_36, %c0_37] : memref<4x2x32xf32, #tpu.memory_space<vmem>>, vector<1x2x32xf32>
    %38 = vector.shape_cast %37 : vector<1x2x32xf32> to vector<2x32xf32>
    %39 = vector.shape_cast %36 : vector<2x32xf32> to vector<1x2x32xf32>
    tpu.vector_store %arg9[%c3_35, %c0_36, %c0_37], %39 {strides = array<i32>} : memref<4x2x32xf32, #tpu.memory_space<vmem>>, vector<1x2x32xf32>,
    %c0_i32_38 = arith.constant 0 : i32
    %40 = arith.cmpi eq, %arg2, %c0_i32_38 : i32
    %41 = arith.extui %40 : i1 to i32
    %c0_i32_39 = arith.constant 0 : i32
    %42 = arith.cmpi ne, %41, %c0_i32_39 : i32
    scf.if %42 {
      %c0_40 = arith.constant 0 : index
      %c0_41 = arith.constant 0 : index
      %c0_42 = arith.constant 0 : index
      %43 = vector.load %arg9[%c0_40, %c0_41, %c0_42] : memref<4x2x32xf32, #tpu.memory_space<vmem>>, vector<4x2x32xf32>
      %c0_43 = arith.constant 0 : index
      %c0_44 = arith.constant 0 : index
      %44 = vector.load %arg5[%c0_43, %c0_44] : memref<4x32xf32, #tpu.memory_space<vmem>>, vector<4x32xf32>
      %45 = vector.shape_cast %44 : vector<4x32xf32> to vector<4x1x32xf32>
      %46 = vector.broadcast %45 : vector<4x1x32xf32> to vector<4x2x32xf32>
      %47 = arith.addf %43, %46 : vector<4x2x32xf32>
      %48 = vector.extract_strided_slice %47 {offsets = [0, 0, 0], sizes = [1, 2, 32], strides = [1, 1, 1]} : vector<4x2x32xf32> to vector<1x2x32xf32>
      %49 = vector.shape_cast %48 : vector<1x2x32xf32> to vector<2x32xf32>
      %cst_45 = arith.constant 5.000000e-01 : f32
      %50 = vector.broadcast %cst_45 : f32 to vector<2x32xf32>
      %51 = arith.mulf %50, %49 : vector<2x32xf32>
      %52 = math.tanh %51 : vector<2x32xf32>
      %cst_46 = arith.constant 5.000000e-01 : f32
      %53 = vector.broadcast %cst_46 : f32 to vector<2x32xf32>
      %54 = arith.mulf %53, %52 : vector<2x32xf32>
      %cst_47 = arith.constant 5.000000e-01 : f32
      %55 = vector.broadcast %cst_47 : f32 to vector<2x32xf32>
      %56 = arith.addf %54, %55 : vector<2x32xf32>
      %57 = vector.extract_strided_slice %47 {offsets = [1, 0, 0], sizes = [1, 2, 32], strides = [1, 1, 1]} : vector<4x2x32xf32> to vector<1x2x32xf32>
      %58 = vector.shape_cast %57 : vector<1x2x32xf32> to vector<2x32xf32>
      %cst_48 = arith.constant 5.000000e-01 : f32
      %59 = vector.broadcast %cst_48 : f32 to vector<2x32xf32>
      %60 = arith.mulf %59, %58 : vector<2x32xf32>
      %61 = math.tanh %60 : vector<2x32xf32>
      %cst_49 = arith.constant 5.000000e-01 : f32
      %62 = vector.broadcast %cst_49 : f32 to vector<2x32xf32>
      %63 = arith.mulf %62, %61 : vector<2x32xf32>
      %cst_50 = arith.constant 5.000000e-01 : f32
      %64 = vector.broadcast %cst_50 : f32 to vector<2x32xf32>
      %65 = arith.addf %63, %64 : vector<2x32xf32>
      %66 = vector.extract_strided_slice %47 {offsets = [2, 0, 0], sizes = [1, 2, 32], strides = [1, 1, 1]} : vector<4x2x32xf32> to vector<1x2x32xf32>
      %67 = vector.shape_cast %66 : vector<1x2x32xf32> to vector<2x32xf32>
      %68 = math.tanh %67 : vector<2x32xf32>
      %69 = vector.extract_strided_slice %47 {offsets = [3, 0, 0], sizes = [1, 2, 32], strides = [1, 1, 1]} : vector<4x2x32xf32> to vector<1x2x32xf32>
      %70 = vector.shape_cast %69 : vector<1x2x32xf32> to vector<2x32xf32>
      %cst_51 = arith.constant 5.000000e-01 : f32
      %71 = vector.broadcast %cst_51 : f32 to vector<2x32xf32>
      %72 = arith.mulf %71, %70 : vector<2x32xf32>
      %73 = math.tanh %72 : vector<2x32xf32>
      %cst_52 = arith.constant 5.000000e-01 : f32
      %74 = vector.broadcast %cst_52 : f32 to vector<2x32xf32>
      %75 = arith.mulf %74, %73 : vector<2x32xf32>
      %cst_53 = arith.constant 5.000000e-01 : f32
      %76 = vector.broadcast %cst_53 : f32 to vector<2x32xf32>
      %77 = arith.addf %75, %76 : vector<2x32xf32>
      %c0_54 = arith.constant 0 : index
      %c0_55 = arith.constant 0 : index
      %78 = vector.load %arg6[%c0_54, %c0_55] : memref<2x32xf32, #tpu.memory_space<vmem>>, vector<2x32xf32>
      %79 = arith.mulf %56, %78 : vector<2x32xf32>
      %80 = arith.mulf %65, %68 : vector<2x32xf32>
      %81 = arith.addf %79, %80 : vector<2x32xf32>
      %82 = math.tanh %81 : vector<2x32xf32>
      %83 = arith.mulf %77, %82 : vector<2x32xf32>
      %c0_56 = arith.constant 0 : index
      %c0_57 = arith.constant 0 : index
      %84 = vector.load %arg8[%c0_56, %c0_57] : memref<2x32xf32, #tpu.memory_space<vmem>>, vector<2x32xf32>
      tpu.vector_store %arg8[%c0_56, %c0_57], %81 {strides = array<i32>} : memref<2x32xf32, #tpu.memory_space<vmem>>, vector<2x32xf32>,
      %c0_58 = arith.constant 0 : index
      %c0_59 = arith.constant 0 : index
      %85 = vector.load %arg7[%c0_58, %c0_59] : memref<2x32xf32, #tpu.memory_space<vmem>>, vector<2x32xf32>
      tpu.vector_store %arg7[%c0_58, %c0_59], %83 {strides = array<i32>} : memref<2x32xf32, #tpu.memory_space<vmem>>, vector<2x32xf32>,
    } else {
    }
    return
  }
  func.func @transform_0(%arg0: i32, %arg1: i32, %arg2: i32) -> (i32, i32) {
    %c0_i32 = arith.constant 0 : i32
    return %arg0, %arg2 : i32, i32
  }
  func.func @transform_1(%arg0: i32, %arg1: i32, %arg2: i32) -> (i32, i32, i32) {
    %c0_i32 = arith.constant 0 : i32
    %c0_i32_0 = arith.constant 0 : i32
    return %c0_i32, %arg2, %arg1 : i32, i32, i32
  }
  func.func @transform_2(%arg0: i32, %arg1: i32, %arg2: i32) -> (i32, i32) {
    %c0_i32 = arith.constant 0 : i32
    %c0_i32_0 = arith.constant 0 : i32
    return %c0_i32, %arg1 : i32, i32
  }
  func.func @transform_3(%arg0: i32, %arg1: i32, %arg2: i32) -> (i32, i32) {
    %c0_i32 = arith.constant 0 : i32
    return %arg0, %arg1 : i32, i32
  }
  func.func @transform_4(%arg0: i32, %arg1: i32, %arg2: i32) -> (i32, i32) {
    %c0_i32 = arith.constant 0 : i32
    return %arg0, %arg1 : i32, i32
  }
  func.func @transform_5(%arg0: i32, %arg1: i32, %arg2: i32) -> (i32, i32) {
    %c0_i32 = arith.constant 0 : i32
    return %arg0, %arg1 : i32, i32
  }
}

</mosaic_0001>

<llo_original>
// kernel: tpu_custom_call.1
$region0: #{tpu_custom_call.1}
  #allocation0 [shape = 'u32[]', space=smem, size = 0x4, offset = 0x4, fixed_abs, tag = 'smem constant byte address 0x4 - core index']
  #allocation1 [shape = 'u32[144,128]{1,0:T(1,128)}', space=vmem, size = 0x12000, scoped, tag = 'internal scratch']
  #allocation2 [shape = 'f32[4,2,32]{2,1,0:T(2,128)}', space=vmem, size = 0x1000, scoped, tag = 'scratch operand']
  %s0 = inlined_call_operand.vmem [shape: f32[2,48], index: 0, kind: input, shape index: {}]
  %s1 = inlined_call_operand.vmem [shape: f32[4,48,32], index: 1, kind: input, shape index: {}]
  %s2 = inlined_call_operand.vmem [shape: f32[4,32], index: 2, kind: input, shape index: {}]
  %s3 = inlined_call_operand.vmem [shape: f32[2,32], index: 3, kind: input, shape index: {}]
  %s4 = inlined_call_operand.hbm [shape: f32[2,32], index: 4, kind: output, shape index: {0}]
  %s5 = inlined_call_operand.hbm [shape: f32[2,32], index: 5, kind: output, shape index: {1}]
  %6 = xla_tuple %s4, %s5
  %s7 = sld [smem:[#allocation0]]
  $region42: #{tpu_custom_call.1} parent=0
    _
  %s9 = ssub.s32 1, %s7
  %s10 = scalar_select 0, %s9, %s7
  $region1: #{tpu_custom_call.1} parent=0
    #allocation3 [shape = 'u8[1024]{0}', space=vmem, size = 0x400, scoped, tag = 'output window, operand 0, single buffered']
    #allocation4 [shape = 's32[1]{0}', space=sflag, size = 0x4, scoped, tag = 'scoped memory for tpu_custom_call.1']
    #allocation5 [shape = 'u8[1024]{0}', space=vmem, size = 0x400, scoped, tag = 'output window, operand 1, single buffered']
    #allocation6 [shape = 's32[1]{0}', space=sflag, size = 0x4, scoped, tag = 'scoped memory for tpu_custom_call.1']
    %11 = vsyncpa [#allocation4], 0
    %12 = vsyncpa [#allocation6], 0
    // Predicated region
    $region2: #{tpu_custom_call.1} parent=1 // pred_check
      _
    $region3: #{tpu_custom_call.1} parent=1 // pred_check_branch
      %14 = sbr.rel (0) target = $region5
    $region4: #{tpu_custom_call.1} parent=1 // pred_region
      _
    $region5: #{tpu_custom_call.1} parent=1 // pred_fallthru
      _
    // Predicated region
    $region6: #{tpu_custom_call.1} parent=1 // pred_check
      _
    $region7: #{tpu_custom_call.1} parent=1 // pred_check_branch
      %16 = sbr.rel (0) target = $region9
    $region8: #{tpu_custom_call.1} parent=1 // pred_region
      _
    $region9: #{tpu_custom_call.1} parent=1 // pred_fallthru
      _
    // Predicated region
    $region10: #{tpu_custom_call.1} parent=1 // pred_check
      _
    $region11: #{tpu_custom_call.1} parent=1 // pred_check_branch
      %18 = sbr.rel (0) target = $region13
    $region12: #{tpu_custom_call.1} parent=1 // pred_region
      _
    $region13: #{tpu_custom_call.1} parent=1 // pred_fallthru
      _
    // Predicated region
    $region14: #{tpu_custom_call.1} parent=1 // pred_check
      _
    $region15: #{tpu_custom_call.1} parent=1 // pred_check_branch
      %20 = sbr.rel (0) target = $region17
    $region16: #{tpu_custom_call.1} parent=1 // pred_region
      _
    $region17: #{tpu_custom_call.1} parent=1 // pred_fallthru
      _
    %p21 = scmp.eq.s32.totalorder 0, 0
    // Predicated region
    $region18: #{tpu_custom_call.1} parent=1 // pred_check
      %p22 = pneg %p21
    $region19: #{tpu_custom_call.1} parent=1 // pred_check_branch
      %24 = sbr.rel (%p22) target = $region21
    $region20: #{tpu_custom_call.1} parent=1 // pred_region
      %vm25 = vcmask 254976
      %26 = vst.msk [vmem:[#allocation2] sm:$0x3] %vm25, 0.0
      %27 = vst.msk [vmem:[#allocation2 + $0x2] sm:$0x3] %vm25, 0.0
      %28 = vst.msk [vmem:[#allocation2 + $0x4] sm:$0x3] %vm25, 0.0
      %29 = vst.msk [vmem:[#allocation2 + $0x6] sm:$0x3] %vm25, 0.0
    $region21: #{tpu_custom_call.1} parent=1 // pred_fallthru
      _
    %v30 = vld [vmem:[%s0] sm:$0x3]
    %v31 = vld [vmem:[#allocation2] sm:$0x3]
    %v32 = vld [vmem:[%s1] sm:$0xff]
    %v33 = vld [vmem:[%s1 + $0x8] sm:$0xff]
    %v34 = vld [vmem:[%s1 + $0x10] sm:$0xff]
    %v35 = vld [vmem:[%s1 + $0x18] sm:$0xff]
    %v36 = vld [vmem:[%s1 + $0x20] sm:$0xff]
    %v37 = vld [vmem:[%s1 + $0x28] sm:$0xff]
    %vm38 = vcmask 392192
    %v40 = vsel %vm38, %v30, 0
    %42 = vmatprep.subr.mxu0 0.0
    %43 = vmatpush1.msra.mxu0 %v32
    %44 = vmatprep.subr.mxu0 0.0
    %45 = vmatpush1.msra.mxu0 %v33
    %46 = vmatprep.subr.mxu0 0.0
    %47 = vmatpush1.msra.mxu0 %v34
    %48 = vmatprep.subr.mxu0 0.0
    %49 = vmatpush1.msra.mxu0 %v35
    %50 = vmatprep.subr.mxu0 0.0
    %51 = vmatpush1.msra.mxu0 %v36
    %52 = vmatprep.subr.mxu0 0.0
    %53 = vmatpush1.msra.mxu0 %v37
    %54 = vmatprep.subr.mxu0 0.0
    %55 = vmatpush1.msra.mxu0 0.0
    %56 = vmatprep.subr.mxu0 0.0
    %57 = vmatpush1.msra.mxu0 0.0
    %58 = vmatprep.subr.mxu0 0.0
    %59 = vmatpush1.msra.mxu0 0.0
    %60 = vmatprep.subr.mxu0 0.0
    %61 = vmatpush1.msra.mxu0 0.0
    %62 = vmatprep.subr.mxu0 0.0
    %63 = vmatpush1.msra.mxu0 0.0
    %64 = vmatprep.subr.mxu0 0.0
    %65 = vmatpush1.msra.mxu0 0.0
    %66 = vmatprep.subr.mxu0 0.0
    %67 = vmatpush1.msra.mxu0 0.0
    %68 = vmatprep.subr.mxu0 0.0
    %69 = vmatpush1.msra.mxu0 0.0
    %70 = vmatprep.subr.mxu0 0.0
    %71 = vmatpush1.msra.mxu0 0.0
    %72 = vmatprep.subr.mxu0 0.0
    %73 = vmatpush1.msra.mxu0 0.0
    %74 = vmatprep.subr.mxu0 0.0
    %75 = vmatpush1.msra.mxu0 0.0
    %76 = vmatprep.subr.mxu0 0.0
    %77 = vmatpush1.msra.mxu0 0.0
    %78 = vmatprep.subr.mxu0 0.0
    %79 = vmatpush1.msra.mxu0 0.0
    %80 = vmatprep.subr.mxu0 0.0
    %81 = vmatpush1.msra.mxu0 0.0
    %82 = vmatprep.subr.mxu0 0.0
    %83 = vmatpush1.msra.mxu0 0.0
    %84 = vmatprep.subr.mxu0 0.0
    %85 = vmatpush1.msra.mxu0 0.0
    %86 = vmatprep.subr.mxu0 0.0
    %87 = vmatpush1.msra.mxu0 0.0
    %88 = vmatprep.subr.mxu0 0.0
    %89 = vmatpush1.msra.mxu0 0.0
    %90 = vmatprep.subr.mxu0 0.0
    %91 = vmatpush1.msra.mxu0 0.0
    %92 = vmatprep.subr.mxu0 0.0
    %93 = vmatpush1.msra.mxu0 0.0
    %94 = vmatprep.subr.mxu0 0.0
    %95 = vmatpush1.msra.mxu0 0.0
    %96 = vmatprep.subr.mxu0 0.0
    %97 = vmatpush1.msra.mxu0 0.0
    %98 = vmatprep.subr.mxu0 0.0
    %99 = vmatpush1.msra.mxu0 0.0
    %100 = vmatprep.subr.mxu0 0.0
    %101 = vmatpush1.msra.mxu0 0.0
    %102 = vmatprep.subr.mxu0 0.0
    %103 = vmatpush1.msra.mxu0 0.0
    %104 = vmatprep.subr.mxu0 0.0
    %105 = vmatpush1.msra.mxu0 0.0
    %106 = vmatprep.mubr.f32.mxu0 0.0
    %107 = vmatmul.mubr.f32.gmra.mrb[0].mxu0 %v40
    %v108 = vpop.f32.mrb[0].mxu0
    %v109 = vadd.f32 0.0, %v108
    %v110 = vpop.f32.mrb[0].mxu0
    %111 = vdwg.mxu0
    %v112 = vadd.f32 %v31, %v109
    %vm113 = vcmask 254976
    %114 = vst.msk [vmem:[#allocation2] sm:$0x3] %vm113, %v112
    %s115 = scalar_lea.vmem [#allocation2], 2
    %v116 = vld [vmem:[%s115] sm:$0x3]
    %s117 = scalar_lea.vmem %s1, 48
    %v118 = vld [vmem:[%s117] sm:$0xff]
    %v119 = vld [vmem:[%s117 + $0x8] sm:$0xff]
    %v120 = vld [vmem:[%s117 + $0x10] sm:$0xff]
    %v121 = vld [vmem:[%s117 + $0x18] sm:$0xff]
    %v122 = vld [vmem:[%s117 + $0x20] sm:$0xff]
    %v123 = vld [vmem:[%s117 + $0x28] sm:$0xff]
    %124 = vmatprep.subr.mxu0 0.0
    %125 = vmatpush1.msra.mxu0 %v118
    %126 = vmatprep.subr.mxu0 0.0
    %127 = vmatpush1.msra.mxu0 %v119
    %128 = vmatprep.subr.mxu0 0.0
    %129 = vmatpush1.msra.mxu0 %v120
    %130 = vmatprep.subr.mxu0 0.0
    %131 = vmatpush1.msra.mxu0 %v121
    %132 = vmatprep.subr.mxu0 0.0
    %133 = vmatpush1.msra.mxu0 %v122
    %134 = vmatprep.subr.mxu0 0.0
    %135 = vmatpush1.msra.mxu0 %v123
    %136 = vmatprep.subr.mxu0 0.0
    %137 = vmatpush1.msra.mxu0 0.0
    %138 = vmatprep.subr.mxu0 0.0
    %139 = vmatpush1.msra.mxu0 0.0
    %140 = vmatprep.subr.mxu0 0.0
    %141 = vmatpush1.msra.mxu0 0.0
    %142 = vmatprep.subr.mxu0 0.0
    %143 = vmatpush1.msra.mxu0 0.0
    %144 = vmatprep.subr.mxu0 0.0
    %145 = vmatpush1.msra.mxu0 0.0
    %146 = vmatprep.subr.mxu0 0.0
    %147 = vmatpush1.msra.mxu0 0.0
    %148 = vmatprep.subr.mxu0 0.0
    %149 = vmatpush1.msra.mxu0 0.0
    %150 = vmatprep.subr.mxu0 0.0
    %151 = vmatpush1.msra.mxu0 0.0
    %152 = vmatprep.subr.mxu0 0.0
    %153 = vmatpush1.msra.mxu0 0.0
    %154 = vmatprep.subr.mxu0 0.0
    %155 = vmatpush1.msra.mxu0 0.0
    %156 = vmatprep.subr.mxu0 0.0
    %157 = vmatpush1.msra.mxu0 0.0
    %158 = vmatprep.subr.mxu0 0.0
    %159 = vmatpush1.msra.mxu0 0.0
    %160 = vmatprep.subr.mxu0 0.0
    %161 = vmatpush1.msra.mxu0 0.0
    %162 = vmatprep.subr.mxu0 0.0
    %163 = vmatpush1.msra.mxu0 0.0
    %164 = vmatprep.subr.mxu0 0.0
    %165 = vmatpush1.msra.mxu0 0.0
    %166 = vmatprep.subr.mxu0 0.0
    %167 = vmatpush1.msra.mxu0 0.0
    %168 = vmatprep.subr.mxu0 0.0
    %169 = vmatpush1.msra.mxu0 0.0
    %170 = vmatprep.subr.mxu0 0.0
    %171 = vmatpush1.msra.mxu0 0.0
    %172 = vmatprep.subr.mxu0 0.0
    %173 = vmatpush1.msra.mxu0 0.0
    %174 = vmatprep.subr.mxu0 0.0
    %175 = vmatpush1.msra.mxu0 0.0
    %176 = vmatprep.subr.mxu0 0.0
    %177 = vmatpush1.msra.mxu0 0.0
    %178 = vmatprep.subr.mxu0 0.0
    %179 = vmatpush1.msra.mxu0 0.0
    %180 = vmatprep.subr.mxu0 0.0
    %181 = vmatpush1.msra.mxu0 0.0
    %182 = vmatprep.subr.mxu0 0.0
    %183 = vmatpush1.msra.mxu0 0.0
    %184 = vmatprep.subr.mxu0 0.0
    %185 = vmatpush1.msra.mxu0 0.0
    %186 = vmatprep.subr.mxu0 0.0
    %187 = vmatpush1.msra.mxu0 0.0
    %188 = vmatprep.mubr.f32.mxu0 0.0
    %189 = vmatmul.mubr.f32.gmra.mrb[0].mxu0 %v40
    %v190 = vpop.f32.mrb[0].mxu0
    %v191 = vadd.f32 0.0, %v190
    %v192 = vpop.f32.mrb[0].mxu0
    %193 = vdwg.mxu0
    %v194 = vadd.f32 %v116, %v191
    %195 = vst.msk [vmem:[%s115] sm:$0x3] %vm113, %v194
    %s196 = scalar_lea.vmem [#allocation2], 4
    %v197 = vld [vmem:[%s196] sm:$0x3]
    %s198 = scalar_lea.vmem %s1, 96
    %v199 = vld [vmem:[%s198] sm:$0xff]
    %v200 = vld [vmem:[%s198 + $0x8] sm:$0xff]
    %v201 = vld [vmem:[%s198 + $0x10] sm:$0xff]
    %v202 = vld [vmem:[%s198 + $0x18] sm:$0xff]
    %v203 = vld [vmem:[%s198 + $0x20] sm:$0xff]
    %v204 = vld [vmem:[%s198 + $0x28] sm:$0xff]
    %205 = vmatprep.subr.mxu0 0.0
    %206 = vmatpush1.msra.mxu0 %v199
    %207 = vmatprep.subr.mxu0 0.0
    %208 = vmatpush1.msra.mxu0 %v200
    %209 = vmatprep.subr.mxu0 0.0
    %210 = vmatpush1.msra.mxu0 %v201
    %211 = vmatprep.subr.mxu0 0.0
    %212 = vmatpush1.msra.mxu0 %v202
    %213 = vmatprep.subr.mxu0 0.0
    %214 = vmatpush1.msra.mxu0 %v203
    %215 = vmatprep.subr.mxu0 0.0
    %216 = vmatpush1.msra.mxu0 %v204
    %217 = vmatprep.subr.mxu0 0.0
    %218 = vmatpush1.msra.mxu0 0.0
    %219 = vmatprep.subr.mxu0 0.0
    %220 = vmatpush1.msra.mxu0 0.0
    %221 = vmatprep.subr.mxu0 0.0
    %222 = vmatpush1.msra.mxu0 0.0
    %223 = vmatprep.subr.mxu0 0.0
    %224 = vmatpush1.msra.mxu0 0.0
    %225 = vmatprep.subr.mxu0 0.0
    %226 = vmatpush1.msra.mxu0 0.0
    %227 = vmatprep.subr.mxu0 0.0
    %228 = vmatpush1.msra.mxu0 0.0
    %229 = vmatprep.subr.mxu0 0.0
    %230 = vmatpush1.msra.mxu0 0.0
    %231 = vmatprep.subr.mxu0 0.0
    %232 = vmatpush1.msra.mxu0 0.0
    %233 = vmatprep.subr.mxu0 0.0
    %234 = vmatpush1.msra.mxu0 0.0
    %235 = vmatprep.subr.mxu0 0.0
    %236 = vmatpush1.msra.mxu0 0.0
    %237 = vmatprep.subr.mxu0 0.0
    %238 = vmatpush1.msra.mxu0 0.0
    %239 = vmatprep.subr.mxu0 0.0
    %240 = vmatpush1.msra.mxu0 0.0
    %241 = vmatprep.subr.mxu0 0.0
    %242 = vmatpush1.msra.mxu0 0.0
    %243 = vmatprep.subr.mxu0 0.0
    %244 = vmatpush1.msra.mxu0 0.0
    %245 = vmatprep.subr.mxu0 0.0
    %246 = vmatpush1.msra.mxu0 0.0
    %247 = vmatprep.subr.mxu0 0.0
    %248 = vmatpush1.msra.mxu0 0.0
    %249 = vmatprep.subr.mxu0 0.0
    %250 = vmatpush1.msra.mxu0 0.0
    %251 = vmatprep.subr.mxu0 0.0
    %252 = vmatpush1.msra.mxu0 0.0
    %253 = vmatprep.subr.mxu0 0.0
    %254 = vmatpush1.msra.mxu0 0.0
    %255 = vmatprep.subr.mxu0 0.0
    %256 = vmatpush1.msra.mxu0 0.0
    %257 = vmatprep.subr.mxu0 0.0
    %258 = vmatpush1.msra.mxu0 0.0
    %259 = vmatprep.subr.mxu0 0.0
    %260 = vmatpush1.msra.mxu0 0.0
    %261 = vmatprep.subr.mxu0 0.0
    %262 = vmatpush1.msra.mxu0 0.0
    %263 = vmatprep.subr.mxu0 0.0
    %264 = vmatpush1.msra.mxu0 0.0
    %265 = vmatprep.subr.mxu0 0.0
    %266 = vmatpush1.msra.mxu0 0.0
    %267 = vmatprep.subr.mxu0 0.0
    %268 = vmatpush1.msra.mxu0 0.0
    %269 = vmatprep.mubr.f32.mxu0 0.0
    %270 = vmatmul.mubr.f32.gmra.mrb[0].mxu0 %v40
    %v271 = vpop.f32.mrb[0].mxu0
    %v272 = vadd.f32 0.0, %v271
    %v273 = vpop.f32.mrb[0].mxu0
    %274 = vdwg.mxu0
    %v275 = vadd.f32 %v197, %v272
    %276 = vst.msk [vmem:[%s196] sm:$0x3] %vm113, %v275
    %s277 = scalar_lea.vmem [#allocation2], 6
    %v278 = vld [vmem:[%s277] sm:$0x3]
    %s279 = scalar_lea.vmem %s1, 144
    %v280 = vld [vmem:[%s279] sm:$0xff]
    %v281 = vld [vmem:[%s279 + $0x8] sm:$0xff]
    %v282 = vld [vmem:[%s279 + $0x10] sm:$0xff]
    %v283 = vld [vmem:[%s279 + $0x18] sm:$0xff]
    %v284 = vld [vmem:[%s279 + $0x20] sm:$0xff]
    %v285 = vld [vmem:[%s279 + $0x28] sm:$0xff]
    %286 = vmatprep.subr.mxu0 0.0
    %287 = vmatpush1.msra.mxu0 %v280
    %288 = vmatprep.subr.mxu0 0.0
    %289 = vmatpush1.msra.mxu0 %v281
    %290 = vmatprep.subr.mxu0 0.0
    %291 = vmatpush1.msra.mxu0 %v282
    %292 = vmatprep.subr.mxu0 0.0
    %293 = vmatpush1.msra.mxu0 %v283
    %294 = vmatprep.subr.mxu0 0.0
    %295 = vmatpush1.msra.mxu0 %v284
    %296 = vmatprep.subr.mxu0 0.0
    %297 = vmatpush1.msra.mxu0 %v285
    %298 = vmatprep.subr.mxu0 0.0
    %299 = vmatpush1.msra.mxu0 0.0
    %300 = vmatprep.subr.mxu0 0.0
    %301 = vmatpush1.msra.mxu0 0.0
    %302 = vmatprep.subr.mxu0 0.0
    %303 = vmatpush1.msra.mxu0 0.0
    %304 = vmatprep.subr.mxu0 0.0
    %305 = vmatpush1.msra.mxu0 0.0
    %306 = vmatprep.subr.mxu0 0.0
    %307 = vmatpush1.msra.mxu0 0.0
    %308 = vmatprep.subr.mxu0 0.0
    %309 = vmatpush1.msra.mxu0 0.0
    %310 = vmatprep.subr.mxu0 0.0
    %311 = vmatpush1.msra.mxu0 0.0
    %312 = vmatprep.subr.mxu0 0.0
    %313 = vmatpush1.msra.mxu0 0.0
    %314 = vmatprep.subr.mxu0 0.0
    %315 = vmatpush1.msra.mxu0 0.0
    %316 = vmatprep.subr.mxu0 0.0
    %317 = vmatpush1.msra.mxu0 0.0
    %318 = vmatprep.subr.mxu0 0.0
    %319 = vmatpush1.msra.mxu0 0.0
    %320 = vmatprep.subr.mxu0 0.0
    %321 = vmatpush1.msra.mxu0 0.0
    %322 = vmatprep.subr.mxu0 0.0
    %323 = vmatpush1.msra.mxu0 0.0
    %324 = vmatprep.subr.mxu0 0.0
    %325 = vmatpush1.msra.mxu0 0.0
    %326 = vmatprep.subr.mxu0 0.0
    %327 = vmatpush1.msra.mxu0 0.0
    %328 = vmatprep.subr.mxu0 0.0
    %329 = vmatpush1.msra.mxu0 0.0
    %330 = vmatprep.subr.mxu0 0.0
    %331 = vmatpush1.msra.mxu0 0.0
    %332 = vmatprep.subr.mxu0 0.0
    %333 = vmatpush1.msra.mxu0 0.0
    %334 = vmatprep.subr.mxu0 0.0
    %335 = vmatpush1.msra.mxu0 0.0
    %336 = vmatprep.subr.mxu0 0.0
    %337 = vmatpush1.msra.mxu0 0.0
    %338 = vmatprep.subr.mxu0 0.0
    %339 = vmatpush1.msra.mxu0 0.0
    %340 = vmatprep.subr.mxu0 0.0
    %341 = vmatpush1.msra.mxu0 0.0
    %342 = vmatprep.subr.mxu0 0.0
    %343 = vmatpush1.msra.mxu0 0.0
    %344 = vmatprep.subr.mxu0 0.0
    %345 = vmatpush1.msra.mxu0 0.0
    %346 = vmatprep.subr.mxu0 0.0
    %347 = vmatpush1.msra.mxu0 0.0
    %348 = vmatprep.subr.mxu0 0.0
    %349 = vmatpush1.msra.mxu0 0.0
    %350 = vmatprep.mubr.f32.mxu0 0.0
    %351 = vmatmul.mubr.f32.gmra.mrb[0].mxu0 %v40
    %v352 = vpop.f32.mrb[0].mxu0
    %v353 = vadd.f32 0.0, %v352
    %v354 = vpop.f32.mrb[0].mxu0
    %355 = vdwg.mxu0
    %v356 = vadd.f32 %v278, %v353
    %357 = vst.msk [vmem:[%s277] sm:$0x3] %vm113, %v356
    // Predicated region
    $region22: #{tpu_custom_call.1} parent=1 // pred_check
      %p358 = pneg %p21
    $region23: #{tpu_custom_call.1} parent=1 // pred_check_branch
      %360 = sbr.rel (%p358) target = $region25
    $region24: #{tpu_custom_call.1} parent=1 // pred_region
      %v361 = vld [vmem:[#allocation2] sm:$0x3]
      %v362 = vld [vmem:[#allocation2 + $0x2] sm:$0x3]
      %v363 = vld [vmem:[#allocation2 + $0x4] sm:$0x3]
      %v364 = vld [vmem:[#allocation2 + $0x6] sm:$0x3]
      %v365 = vld [vmem:[%s2] sm:$0xf]
      %v368 = vunpack.c.l.s4 1966171168
      %v369 = vunpack.c.0.s8 %v368
      %v370 = vlaneseq
      %v371 = vshrl.u32 %v370, 7
      %v372 = vsub.s32 %v369, %v371
      %v373 = vrot.slane %v365, %v372
      %v374 = vcombine.high %v373, %v373
      %v376 = vunpack.c.l.s4 1966171168
      %v377 = vunpack.c.0.s8 %v376
      %v378 = vlaneseq
      %v379 = vshrl.u32 %v378, 7
      %v380 = vsub.s32 %v377, %v379
      %v381 = vrot.slane %v373, %v380
      %v383 = vunpack.c.l.s4 1966171168
      %v384 = vunpack.c.0.s8 %v383
      %v385 = vlaneseq
      %v386 = vshrl.u32 %v385, 7
      %v387 = vsub.s32 %v384, %v386
      %v388 = vrot.slane %v374, %v387
      %v389 = vcombine.high %v381, %v381
      %v390 = vcombine.high %v388, %v388
      %v391 = vlaneseq
      %v392 = vshrl.u32 %v391, 7
      %v393 = vsub.s32 0, %v392
      %v394 = vrot.slane %v381, %v393
      %v395 = vlaneseq
      %v396 = vshrl.u32 %v395, 7
      %v397 = vsub.s32 0, %v396
      %v398 = vrot.slane %v388, %v397
      %v399 = vlaneseq
      %v400 = vshrl.u32 %v399, 7
      %v401 = vsub.s32 0, %v400
      %v402 = vrot.slane %v389, %v401
      %v403 = vlaneseq
      %v404 = vshrl.u32 %v403, 7
      %v405 = vsub.s32 0, %v404
      %v406 = vrot.slane %v390, %v405
      %v411 = vadd.f32 %v361, %v394
      %v412 = vadd.f32 %v362, %v398
      %v413 = vadd.f32 %v363, %v402
      %v414 = vadd.f32 %v364, %v406
      %v415 = vmul.f32 %v411, 0.5
      %v416 = vtanh.pop %v415
      %v417 = vmul.f32 %v416, 0.5
      %v418 = vadd.f32 %v417, 0.5
      %v419 = vmul.f32 %v412, 0.5
      %v420 = vtanh.pop %v419
      %v421 = vmul.f32 %v420, 0.5
      %v422 = vadd.f32 %v421, 0.5
      %v423 = vtanh.pop %v413
      %v424 = vmul.f32 %v414, 0.5
      %v425 = vtanh.pop %v424
      %v426 = vmul.f32 %v425, 0.5
      %v427 = vadd.f32 %v426, 0.5
      %v428 = vld [vmem:[%s3] sm:$0x3]
      %v429 = vmul.f32 %v418, %v428
      %v430 = vmul.f32 %v422, %v423
      %v431 = vadd.f32 %v429, %v430
      %v432 = vtanh.pop %v431
      %v433 = vmul.f32 %v427, %v432
      %434 = vst.msk [vmem:[#allocation5] sm:$0x3] %vm113, %v431
      %435 = vst.msk [vmem:[#allocation3] sm:$0x3] %vm113, %v433
    $region25: #{tpu_custom_call.1} parent=1 // pred_fallthru
      _
    // Predicated region
    $region26: #{tpu_custom_call.1} parent=1 // pred_check
      _
    $region27: #{tpu_custom_call.1} parent=1 // pred_check_branch
      %437 = sbr.rel (0) target = $region29
    $region28: #{tpu_custom_call.1} parent=1 // pred_region
      %s439 = ssub.s32 32, 32
      %440 = vsyncadd [#allocation4], %s439
      %s442 = sshll.u32 [#allocation3], 4
      %s443 = int_to_ptr.vmem [resolvable:$true] %s442
      %445 = dma.vmem_to_hbm [thread:$0]  %s443, 32, %s4, [#allocation4]
    $region29: #{tpu_custom_call.1} parent=1 // pred_fallthru
      _
    // Predicated region
    $region30: #{tpu_custom_call.1} parent=1 // pred_check
      _
    $region31: #{tpu_custom_call.1} parent=1 // pred_check_branch
      %447 = sbr.rel (0) target = $region33
    $region32: #{tpu_custom_call.1} parent=1 // pred_region
      %s449 = ssub.s32 32, 32
      %450 = vsyncadd [#allocation6], %s449
      %s452 = sshll.u32 [#allocation5], 4
      %s453 = int_to_ptr.vmem [resolvable:$true] %s452
      %455 = dma.vmem_to_hbm [thread:$0]  %s453, 32, %s5, [#allocation6]
    $region33: #{tpu_custom_call.1} parent=1 // pred_fallthru
      _
    // Predicated region
    $region34: #{tpu_custom_call.1} parent=1 // pred_check
      _
    $region35: #{tpu_custom_call.1} parent=1 // pred_check_branch
      %457 = sbr.rel (0) target = $region37
    $region36: #{tpu_custom_call.1} parent=1 // pred_region
      %458 = dma.done [#allocation4], 32
    $region37: #{tpu_custom_call.1} parent=1 // pred_fallthru
      _
    // Predicated region
    $region38: #{tpu_custom_call.1} parent=1 // pred_check
      _
    $region39: #{tpu_custom_call.1} parent=1 // pred_check_branch
      %460 = sbr.rel (0) target = $region41
    $region40: #{tpu_custom_call.1} parent=1 // pred_region
      %461 = dma.done [#allocation6], 32
    $region41: #{tpu_custom_call.1} parent=1 // pred_fallthru
      _
    %462 = vsyncpa [#allocation4], 1
    %463 = vsyncpa [#allocation6], 1

</llo_original>
